<compile_context>
chip_gen: v7x
topology: tpu7x:2x2x1
jax: 0.10.0
libtpu: 0.0.40
codegen_flags: <defaults>
</compile_context>

<pallas_src>
import functools

import jax
import jax.numpy as jnp
from jax.experimental import pallas as pl
from jax.experimental.pallas import tpu as pltpu


D_IN, H = 200, 100            # logical sizes from the PyTorch module
D_IN_P, H_P = 256, 128        # lane-dense padded sizes
N_HEADS = 2                   # branch1 || branch2 fused


def _mlp_kernel(x_ref, w1_ref, b1_ref, w2_ref, b2_ref, wh_ref, bh_ref, o_ref):
    # Fused forward: (tb,256)@(256,128) -> tanh -> (tb,128)@(128,128) -> tanh
    # -> (tb,128)@(128,2) + bias.  All matmuls accumulate in f32 on the MXU;
    # bias adds and tanh stay f32 on the VPU/EUP (v5e-safe).
    x = x_ref[...]
    h1 = jnp.tanh(
        jnp.dot(x, w1_ref[...], preferred_element_type=jnp.float32) + b1_ref[...]
    )
    h2 = jnp.tanh(
        jnp.dot(h1.astype(w2_ref.dtype), w2_ref[...],
                preferred_element_type=jnp.float32) + b2_ref[...]
    )
    o_ref[...] = (
        jnp.dot(h2.astype(wh_ref.dtype), wh_ref[...],
                preferred_element_type=jnp.float32) + bh_ref[...]
    )


def _round_up(n, m):
    return ((n + m - 1) // m) * m


@functools.partial(jax.jit, static_argnames=("tile_b", "use_bf16"))
def neural_network_mod_forward(x, params, tile_b=256, use_bf16=False):
    """Pallas forward pass of NeuralNetworkMod.

    x: (B, 200) float32.  Returns (out1, out2), each (B, 1) float32.
    use_bf16: feed bf16 operands to the MXU (f32 accumulate) — recommended on
    v6e / v7x; keep False for bit-accurate f32.
    """
    (w1, b1, w2, b2, wb1, bb1, wb2, bb2) = params
    B, d_in = x.shape
    assert d_in == D_IN

    # --- fuse the two 1-column heads into one (H, 2) matmul ------------------
    wh = jnp.concatenate([wb1, wb2], axis=1)          # (100, 2)
    bh = jnp.concatenate([bb1, bb2], axis=1)          # (1, 2)

    # --- zero-pad to lane-dense, MXU-friendly shapes (exact: pads are zeros) --
    w1p = jnp.pad(w1, ((0, D_IN_P - D_IN), (0, H_P - H)))   # (256, 128)
    b1p = jnp.pad(b1, ((0, 0), (0, H_P - H)))               # (1, 128)
    w2p = jnp.pad(w2, ((0, H_P - H), (0, H_P - H)))         # (128, 128)
    b2p = jnp.pad(b2, ((0, 0), (0, H_P - H)))               # (1, 128)
    whp = jnp.pad(wh, ((0, H_P - H), (0, 0)))               # (128, 2)

    # --- batch tiling: big tiles, pad B up instead of asserting --------------
    tb = min(tile_b, _round_up(B, 8))
    B_pad = _round_up(B, tb)
    xp = jnp.pad(x, ((0, B_pad - B), (0, D_IN_P - D_IN)))   # (B_pad, 256)

    mm_dtype = jnp.bfloat16 if use_bf16 else jnp.float32
    xp = xp.astype(mm_dtype)
    w1p = w1p.astype(mm_dtype)
    w2p = w2p.astype(mm_dtype)
    whp = whp.astype(mm_dtype)

    grid = (B_pad // tb,)
    full = lambda shape: pl.BlockSpec(shape, lambda i: (0,) * len(shape))

    out = pl.pallas_call(
        _mlp_kernel,
        out_shape=jax.ShapeDtypeStruct((B_pad, N_HEADS), jnp.float32),
        grid_spec=pltpu.PrefetchScalarGridSpec(
            num_scalar_prefetch=0,
            grid=grid,
            in_specs=[
                pl.BlockSpec((tb, D_IN_P), lambda i: (i, 0)),   # x tile
                full((D_IN_P, H_P)),                            # w1 (resident)
                full((1, H_P)),                                 # b1
                full((H_P, H_P)),                               # w2
                full((1, H_P)),                                 # b2
                full((H_P, N_HEADS)),                           # fused head W
                full((1, N_HEADS)),                             # fused head b
            ],
            out_specs=pl.BlockSpec((tb, N_HEADS), lambda i: (i, 0)),
        ),
        compiler_params=pltpu.CompilerParams(
            dimension_semantics=("parallel",)
        ),
    )(xp, w1p, b1p, w2p, b2p, whp, bh)

    out = out[:B]
    return out[:, 0:1], out[:, 1:2]


def init_params(key):
    """Deterministic init mimicking PyTorch nn.Linear default U[-1/sqrt(fan_in), +...]."""
    def linear(key, fan_in, fan_out):
        kw, kb = jax.random.split(key)
        bound = 1.0 / jnp.sqrt(fan_in)
        # stored as (in, out) so kernel computes x @ W
        w = jax.random.uniform(kw, (fan_in, fan_out), jnp.float32, -bound, bound)
        b = jax.random.uniform(kb, (1, fan_out), jnp.float32, -bound, bound)
        return w, b

    k1, k2, k3, k4 = jax.random.split(key, 4)
    w1, b1 = linear(k1, 200, 100)
    w2, b2 = linear(k2, 100, 100)
    wb1, bb1 = linear(k3, 100, 1)
    wb2, bb2 = linear(k4, 100, 1)
    return (w1, b1, w2, b2, wb1, bb1, wb2, bb2)


if __name__ == "__main__":
    key = jax.random.PRNGKey(0)
    kx, kp = jax.random.split(key)

    # Non-multiple batch on purpose: exercises padding + 2 grid steps (v7x TCs).
    B = 500
    x = jax.random.normal(kx, (B, D_IN), jnp.float32)
    params = init_params(kp)

    # Pure-JAX reference.
    (w1, b1, w2, b2, wb1, bb1, wb2, bb2) = params
    h = jnp.tanh(x @ w1 + b1)
    h = jnp.tanh(h @ w2 + b2)
    ref1 = h @ wb1 + bb1
    ref2 = h @ wb2 + bb2

    # f32 path: bit-close to reference.
    out1, out2 = neural_network_mod_forward(x, params, tile_b=256, use_bf16=False)
    jax.block_until_ready((out1, out2))
    assert out1.shape == (B, 1) and out2.shape == (B, 1)
    assert jnp.allclose(out1, ref1, atol=1e-4, rtol=1e-4)
    assert jnp.allclose(out2, ref2, atol=1e-4, rtol=1e-4)

    # bf16-MXU path (v6e/v7x friendly): looser tolerance, f32 accumulate.
    o1b, o2b = neural_network_mod_forward(x, params, tile_b=256, use_bf16=True)
    jax.block_until_ready((o1b, o2b))
    assert jnp.allclose(o1b, ref1, atol=0.1, rtol=0.1)
    assert jnp.allclose(o2b, ref2, atol=0.1, rtol=0.1)

    print("KERNEL_OK")
</pallas_src>

<mosaic_0001>
module attributes {stable_mosaic.version = 11 : i64} {
  func.func @_mlp_kernel(%arg0: i32, %arg1: memref<256x256xf32, #tpu.memory_space<vmem>>, %arg2: memref<256x128xf32, #tpu.memory_space<vmem>>, %arg3: memref<1x128xf32, #tpu.memory_space<vmem>>, %arg4: memref<128x128xf32, #tpu.memory_space<vmem>>, %arg5: memref<1x128xf32, #tpu.memory_space<vmem>>, %arg6: memref<128x2xf32, #tpu.memory_space<vmem>>, %arg7: memref<1x2xf32, #tpu.memory_space<vmem>>, %arg8: memref<256x2xf32, #tpu.memory_space<vmem>>) attributes {dimension_semantics = [#tpu.dimension_semantics<parallel>], iteration_bounds = array<i64: 2>, scalar_prefetch = 0 : i64, scratch_operands = 0 : i64, tpu.core_type = #tpu.core_type<tc>, window_params = [{transform_indices = @transform_0, window_bounds = array<i64: 256, 256>}, {pipeline_mode = #tpu.pipeline_mode<synchronous>, transform_indices = @transform_1, window_bounds = array<i64: 256, 128>}, {pipeline_mode = #tpu.pipeline_mode<synchronous>, transform_indices = @transform_2, window_bounds = array<i64: 1, 128>}, {pipeline_mode = #tpu.pipeline_mode<synchronous>, transform_indices = @transform_3, window_bounds = array<i64: 128, 128>}, {pipeline_mode = #tpu.pipeline_mode<synchronous>, transform_indices = @transform_4, window_bounds = array<i64: 1, 128>}, {pipeline_mode = #tpu.pipeline_mode<synchronous>, transform_indices = @transform_5, window_bounds = array<i64: 128, 2>}, {pipeline_mode = #tpu.pipeline_mode<synchronous>, transform_indices = @transform_6, window_bounds = array<i64: 1, 2>}, {transform_indices = @transform_7, window_bounds = array<i64: 256, 2>}]} {
    %c0 = arith.constant 0 : index
    %c0_0 = arith.constant 0 : index
    %0 = vector.load %arg1[%c0, %c0_0] : memref<256x256xf32, #tpu.memory_space<vmem>>, vector<256x256xf32>
    %c0_1 = arith.constant 0 : index
    %c0_2 = arith.constant 0 : index
    %1 = vector.load %arg2[%c0_1, %c0_2] : memref<256x128xf32, #tpu.memory_space<vmem>>, vector<256x128xf32>
    %cst = arith.constant dense<0.000000e+00> : vector<256x128xf32>
    %2 = tpu.matmul %0, %1, %cst {dimension_numbers = #tpu.dot_dimension_numbers<[1], [0], [0], [1], [0, 0, 1, 1], [], []>} : vector<256x256xf32>, vector<256x128xf32>, vector<256x128xf32> -> vector<256x128xf32>
    %c0_3 = arith.constant 0 : index
    %c0_4 = arith.constant 0 : index
    %3 = vector.load %arg3[%c0_3, %c0_4] : memref<1x128xf32, #tpu.memory_space<vmem>>, vector<1x128xf32>
    %4 = vector.broadcast %3 : vector<1x128xf32> to vector<256x128xf32>
    %5 = arith.addf %2, %4 : vector<256x128xf32>
    %6 = math.tanh %5 : vector<256x128xf32>
    %c0_5 = arith.constant 0 : index
    %c0_6 = arith.constant 0 : index
    %7 = vector.load %arg4[%c0_5, %c0_6] : memref<128x128xf32, #tpu.memory_space<vmem>>, vector<128x128xf32>
    %cst_7 = arith.constant dense<0.000000e+00> : vector<256x128xf32>
    %8 = tpu.matmul %6, %7, %cst_7 {dimension_numbers = #tpu.dot_dimension_numbers<[1], [0], [0], [1], [0, 0, 1, 1], [], []>} : vector<256x128xf32>, vector<128x128xf32>, vector<256x128xf32> -> vector<256x128xf32>
    %c0_8 = arith.constant 0 : index
    %c0_9 = arith.constant 0 : index
    %9 = vector.load %arg5[%c0_8, %c0_9] : memref<1x128xf32, #tpu.memory_space<vmem>>, vector<1x128xf32>
    %10 = vector.broadcast %9 : vector<1x128xf32> to vector<256x128xf32>
    %11 = arith.addf %8, %10 : vector<256x128xf32>
    %12 = math.tanh %11 : vector<256x128xf32>
    %c0_10 = arith.constant 0 : index
    %c0_11 = arith.constant 0 : index
    %13 = vector.load %arg6[%c0_10, %c0_11] : memref<128x2xf32, #tpu.memory_space<vmem>>, vector<128x2xf32>
    %cst_12 = arith.constant dense<0.000000e+00> : vector<256x2xf32>
    %14 = tpu.matmul %12, %13, %cst_12 {dimension_numbers = #tpu.dot_dimension_numbers<[1], [0], [0], [1], [0, 0, 1, 1], [], []>} : vector<256x128xf32>, vector<128x2xf32>, vector<256x2xf32> -> vector<256x2xf32>
    %c0_13 = arith.constant 0 : index
    %c0_14 = arith.constant 0 : index
    %15 = vector.load %arg7[%c0_13, %c0_14] : memref<1x2xf32, #tpu.memory_space<vmem>>, vector<1x2xf32>
    %16 = vector.broadcast %15 : vector<1x2xf32> to vector<256x2xf32>
    %17 = arith.addf %14, %16 : vector<256x2xf32>
    %c0_15 = arith.constant 0 : index
    %c0_16 = arith.constant 0 : index
    %18 = vector.load %arg8[%c0_15, %c0_16] : memref<256x2xf32, #tpu.memory_space<vmem>>, vector<256x2xf32>
    tpu.vector_store %arg8[%c0_15, %c0_16], %17 {strides = array<i32>} : memref<256x2xf32, #tpu.memory_space<vmem>>, vector<256x2xf32>,
    return
  }
  func.func @transform_0(%arg0: i32) -> (i32, i32) {
    %c0_i32 = arith.constant 0 : i32
    %c0_i32_0 = arith.constant 0 : i32
    return %arg0, %c0_i32 : i32, i32
  }
  func.func @transform_1(%arg0: i32) -> (i32, i32) {
    %c0_i32 = arith.constant 0 : i32
    %c0_i32_0 = arith.constant 0 : i32
    %c0_i32_1 = arith.constant 0 : i32
    return %c0_i32, %c0_i32_0 : i32, i32
  }
  func.func @transform_2(%arg0: i32) -> (i32, i32) {
    %c0_i32 = arith.constant 0 : i32
    %c0_i32_0 = arith.constant 0 : i32
    %c0_i32_1 = arith.constant 0 : i32
    return %c0_i32, %c0_i32_0 : i32, i32
  }
  func.func @transform_3(%arg0: i32) -> (i32, i32) {
    %c0_i32 = arith.constant 0 : i32
    %c0_i32_0 = arith.constant 0 : i32
    %c0_i32_1 = arith.constant 0 : i32
    return %c0_i32, %c0_i32_0 : i32, i32
  }
  func.func @transform_4(%arg0: i32) -> (i32, i32) {
    %c0_i32 = arith.constant 0 : i32
    %c0_i32_0 = arith.constant 0 : i32
    %c0_i32_1 = arith.constant 0 : i32
    return %c0_i32, %c0_i32_0 : i32, i32
  }
  func.func @transform_5(%arg0: i32) -> (i32, i32) {
    %c0_i32 = arith.constant 0 : i32
    %c0_i32_0 = arith.constant 0 : i32
    %c0_i32_1 = arith.constant 0 : i32
    return %c0_i32, %c0_i32_0 : i32, i32
  }
  func.func @transform_6(%arg0: i32) -> (i32, i32) {
    %c0_i32 = arith.constant 0 : i32
    %c0_i32_0 = arith.constant 0 : i32
    %c0_i32_1 = arith.constant 0 : i32
    return %c0_i32, %c0_i32_0 : i32, i32
  }
  func.func @transform_7(%arg0: i32) -> (i32, i32) {
    %c0_i32 = arith.constant 0 : i32
    %c0_i32_0 = arith.constant 0 : i32
    return %arg0, %c0_i32 : i32, i32
  }
}

</mosaic_0001>

<llo_original>
// kernel: neural_network_mod_forward.1
$region0: #{neural_network_mod_forward.1}
  #allocation0 [shape = 'u32[]', space=smem, size = 0x4, offset = 0x4, fixed_abs, tag = 'smem constant byte address 0x4 - core index']
  #allocation1 [shape = 'u32[144,128]{1,0:T(1,128)}', space=vmem, size = 0x12000, scoped, tag = 'internal scratch']
  %s0 = inlined_call_operand.vmem [shape: f32[512,256], index: 0, kind: input, shape index: {}]
  %s1 = inlined_call_operand.vmem [shape: f32[256,128], index: 1, kind: input, shape index: {}]
  %s2 = inlined_call_operand.vmem [shape: f32[1,128], index: 2, kind: input, shape index: {}]
  %s3 = inlined_call_operand.vmem [shape: f32[128,128], index: 3, kind: input, shape index: {}]
  %s4 = inlined_call_operand.vmem [shape: f32[1,128], index: 4, kind: input, shape index: {}]
  %s5 = inlined_call_operand.vmem [shape: f32[128,2], index: 5, kind: input, shape index: {}]
  %s6 = inlined_call_operand.vmem [shape: f32[1,2], index: 6, kind: input, shape index: {}]
  %s7 = inlined_call_operand.vmem [shape: f32[512,2], index: 7, kind: output, shape index: {}]
  %s8 = sld [smem:[#allocation0]]
  $region61: #{neural_network_mod_forward.1} parent=0
    _
  %s10 = ssub.s32 1, %s8
  %s11 = scalar_select 0, %s10, %s8
  loop: start=0, step=1, limit=4
  $region2: #{neural_network_mod_forward.1} parent=0 // loop_pre_header
    _
  $region3: #{neural_network_mod_forward.1} parent=0 // loop_header
    %s13 = sphi 0, %s17
    %p14 = scmp.ge.s32.totalorder %s13, 4
    %s23 = sphi 0, %s25
    %s26 = sphi 0, %s23
    %s27 = sphi 0, %s26
    %s43 = sphi 0, %s27
    %s47 = sphi 0, %s47
    %s49 = sphi 0, %s47
    %s50 = sphi 0, %s49
    %s64 = sphi 0, %s50
    %s68 = sphi 0, %s68
    %s70 = sphi 0, %s68
    %s71 = sphi 0, %s70
    %s85 = sphi 0, %s71
    %s89 = sphi 0, %s89
    %s91 = sphi 0, %s89
    %s92 = sphi 0, %s91
    %s106 = sphi 0, %s92
    %s110 = sphi 0, %s110
    %s112 = sphi 0, %s110
    %s113 = sphi 0, %s112
    %s127 = sphi 0, %s113
    %s131 = sphi 0, %s131
    %s133 = sphi 0, %s131
    %s134 = sphi 0, %s133
    %s148 = sphi 0, %s134
    %s152 = sphi 0, %s152
    %s154 = sphi 0, %s152
    %s155 = sphi 0, %s154
    %s169 = sphi 0, %s155
    %s175 = sphi 0, %s177
    %s178 = sphi 0, %s175
    %s179 = sphi 0, %s178
    %s195 = sphi 0, %s179
  $region4: #{neural_network_mod_forward.1} parent=0 // loop_header_branch
    %16 = sbr.rel (%p14) target = $region8
  $region5: #{neural_network_mod_forward.1} parent=0 // loop_body
    %s18 = ssub.s32 %s13, 1
    %s19 = ssub.s32 %s13, 2
    %s20 = sadd.s32 %s13, 1
    %s21 = ssub.s32 %s13, %s20
    %p22 = scmp.eq.s32.totalorder %s21, 0
    %s24 = sadd.s32 %s23, 1
    %s25 = scalar_select %p22, %s23, %s24
    %p28 = pneg %p22
    %p29 = scmp.eq.s32.totalorder %s13, 1
    %p30 = por %p28, %p29
    %p31 = scmp.ne.s32.totalorder %s23, %s26
    %p32 = scmp.eq.s32.totalorder %s13, 0
    %p33 = por %p31, %p32
    %p34 = scmp.ne.s32.totalorder %s23, %s26
    %p35 = scmp.eq.s32.totalorder %s18, 1
    %p36 = por %p34, %p35
    %p37 = scmp.ne.s32.totalorder %s26, %s27
    %p38 = scmp.eq.s32.totalorder %s18, 0
    %p39 = por %p37, %p38
    %p40 = scmp.ne.s32.totalorder %s26, %s27
    %p41 = scmp.eq.s32.totalorder %s19, 1
    %p42 = por %p40, %p41
    %p44 = scmp.ne.s32.totalorder %s27, %s43
    %p45 = scmp.eq.s32.totalorder %s19, 0
    %p46 = por %p44, %p45
    %s48 = sadd.s32 %s47, 1
    %p51 = scmp.eq.s32.totalorder %s13, 1
    %p52 = scmp.ne.s32.totalorder %s47, %s49
    %p53 = scmp.eq.s32.totalorder %s13, 0
    %p54 = por %p52, %p53
    %p55 = scmp.ne.s32.totalorder %s47, %s49
    %p56 = scmp.eq.s32.totalorder %s18, 1
    %p57 = por %p55, %p56
    %p58 = scmp.ne.s32.totalorder %s49, %s50
    %p59 = scmp.eq.s32.totalorder %s18, 0
    %p60 = por %p58, %p59
    %p61 = scmp.ne.s32.totalorder %s49, %s50
    %p62 = scmp.eq.s32.totalorder %s19, 1
    %p63 = por %p61, %p62
    %p65 = scmp.ne.s32.totalorder %s50, %s64
    %p66 = scmp.eq.s32.totalorder %s19, 0
    %p67 = por %p65, %p66
    %s69 = sadd.s32 %s68, 1
    %p72 = scmp.eq.s32.totalorder %s13, 1
    %p73 = scmp.ne.s32.totalorder %s68, %s70
    %p74 = scmp.eq.s32.totalorder %s13, 0
    %p75 = por %p73, %p74
    %p76 = scmp.ne.s32.totalorder %s68, %s70
    %p77 = scmp.eq.s32.totalorder %s18, 1
    %p78 = por %p76, %p77
    %p79 = scmp.ne.s32.totalorder %s70, %s71
    %p80 = scmp.eq.s32.totalorder %s18, 0
    %p81 = por %p79, %p80
    %p82 = scmp.ne.s32.totalorder %s70, %s71
    %p83 = scmp.eq.s32.totalorder %s19, 1
    %p84 = por %p82, %p83
    %p86 = scmp.ne.s32.totalorder %s71, %s85
    %p87 = scmp.eq.s32.totalorder %s19, 0
    %p88 = por %p86, %p87
    %s90 = sadd.s32 %s89, 1
    %p93 = scmp.eq.s32.totalorder %s13, 1
    %p94 = scmp.ne.s32.totalorder %s89, %s91
    %p95 = scmp.eq.s32.totalorder %s13, 0
    %p96 = por %p94, %p95
    %p97 = scmp.ne.s32.totalorder %s89, %s91
    %p98 = scmp.eq.s32.totalorder %s18, 1
    %p99 = por %p97, %p98
    %p100 = scmp.ne.s32.totalorder %s91, %s92
    %p101 = scmp.eq.s32.totalorder %s18, 0
    %p102 = por %p100, %p101
    %p103 = scmp.ne.s32.totalorder %s91, %s92
    %p104 = scmp.eq.s32.totalorder %s19, 1
    %p105 = por %p103, %p104
    %p107 = scmp.ne.s32.totalorder %s92, %s106
    %p108 = scmp.eq.s32.totalorder %s19, 0
    %p109 = por %p107, %p108
    %s111 = sadd.s32 %s110, 1
    %p114 = scmp.eq.s32.totalorder %s13, 1
    %p115 = scmp.ne.s32.totalorder %s110, %s112
    %p116 = scmp.eq.s32.totalorder %s13, 0
    %p117 = por %p115, %p116
    %p118 = scmp.ne.s32.totalorder %s110, %s112
    %p119 = scmp.eq.s32.totalorder %s18, 1
    %p120 = por %p118, %p119
    %p121 = scmp.ne.s32.totalorder %s112, %s113
    %p122 = scmp.eq.s32.totalorder %s18, 0
    %p123 = por %p121, %p122
    %p124 = scmp.ne.s32.totalorder %s112, %s113
    %p125 = scmp.eq.s32.totalorder %s19, 1
    %p126 = por %p124, %p125
    %p128 = scmp.ne.s32.totalorder %s113, %s127
    %p129 = scmp.eq.s32.totalorder %s19, 0
    %p130 = por %p128, %p129
    %s132 = sadd.s32 %s131, 1
    %p135 = scmp.eq.s32.totalorder %s13, 1
    %p136 = scmp.ne.s32.totalorder %s131, %s133
    %p137 = scmp.eq.s32.totalorder %s13, 0
    %p138 = por %p136, %p137
    %p139 = scmp.ne.s32.totalorder %s131, %s133
    %p140 = scmp.eq.s32.totalorder %s18, 1
    %p141 = por %p139, %p140
    %p142 = scmp.ne.s32.totalorder %s133, %s134
    %p143 = scmp.eq.s32.totalorder %s18, 0
    %p144 = por %p142, %p143
    %p145 = scmp.ne.s32.totalorder %s133, %s134
    %p146 = scmp.eq.s32.totalorder %s19, 1
    %p147 = por %p145, %p146
    %p149 = scmp.ne.s32.totalorder %s134, %s148
    %p150 = scmp.eq.s32.totalorder %s19, 0
    %p151 = por %p149, %p150
    %s153 = sadd.s32 %s152, 1
    %p156 = scmp.eq.s32.totalorder %s13, 1
    %p157 = scmp.ne.s32.totalorder %s152, %s154
    %p158 = scmp.eq.s32.totalorder %s13, 0
    %p159 = por %p157, %p158
    %p160 = scmp.ne.s32.totalorder %s152, %s154
    %p161 = scmp.eq.s32.totalorder %s18, 1
    %p162 = por %p160, %p161
    %p163 = scmp.ne.s32.totalorder %s154, %s155
    %p164 = scmp.eq.s32.totalorder %s18, 0
    %p165 = por %p163, %p164
    %p166 = scmp.ne.s32.totalorder %s154, %s155
    %p167 = scmp.eq.s32.totalorder %s19, 1
    %p168 = por %p166, %p167
    %p170 = scmp.ne.s32.totalorder %s155, %s169
    %p171 = scmp.eq.s32.totalorder %s19, 0
    %p172 = por %p170, %p171
    %s173 = ssub.s32 %s13, %s20
    %p174 = scmp.eq.s32.totalorder %s173, 0
    %s176 = sadd.s32 %s175, 1
    %s177 = scalar_select %p174, %s175, %s176
    %p180 = pneg %p174
    %p181 = scmp.eq.s32.totalorder %s13, 1
    %p182 = por %p180, %p181
    %p183 = scmp.ne.s32.totalorder %s175, %s178
    %p184 = scmp.eq.s32.totalorder %s13, 0
    %p185 = por %p183, %p184
    %p186 = scmp.ne.s32.totalorder %s175, %s178
    %p187 = scmp.eq.s32.totalorder %s18, 1
    %p188 = por %p186, %p187
    %p189 = scmp.ne.s32.totalorder %s178, %s179
    %p190 = scmp.eq.s32.totalorder %s18, 0
    %p191 = por %p189, %p190
    %p192 = scmp.ne.s32.totalorder %s178, %s179
    %p193 = scmp.eq.s32.totalorder %s19, 1
    %p194 = por %p192, %p193
    %p196 = scmp.ne.s32.totalorder %s179, %s195
    %p197 = scmp.eq.s32.totalorder %s19, 0
    %p198 = por %p196, %p197
    %p199 = scmp.le.s32.totalorder 1, %s13
    %p200 = scmp.lt.s32.totalorder %s13, 3
    %p201 = pnand %p199, %p200
    %p202 = pneg %p201
    // Predicated region
    $region9: #{neural_network_mod_forward.1} parent=5 // pred_check
      _
    $region10: #{neural_network_mod_forward.1} parent=5 // pred_check_branch
      %204 = sbr.rel (%p201) target = $region12
    $region11: #{neural_network_mod_forward.1} parent=5 // pred_region
      %s205 = ssub.s32 %s13, 1
      // Predicated region
      $region13: #{neural_network_mod_forward.1} parent=11 // pred_check
        %p206 = pneg %p60
      $region14: #{neural_network_mod_forward.1} parent=11 // pred_check_branch
        %208 = sbr.rel (%p206) target = $region16
      $region15: #{neural_network_mod_forward.1} parent=11 // pred_region
        _
      $region16: #{neural_network_mod_forward.1} parent=11 // pred_fallthru
        _
      // Predicated region
      $region17: #{neural_network_mod_forward.1} parent=11 // pred_check
        %p209 = pneg %p81
      $region18: #{neural_network_mod_forward.1} parent=11 // pred_check_branch
        %211 = sbr.rel (%p209) target = $region20
      $region19: #{neural_network_mod_forward.1} parent=11 // pred_region
        _
      $region20: #{neural_network_mod_forward.1} parent=11 // pred_fallthru
        _
      // Predicated region
      $region21: #{neural_network_mod_forward.1} parent=11 // pred_check
        %p212 = pneg %p102
      $region22: #{neural_network_mod_forward.1} parent=11 // pred_check_branch
        %214 = sbr.rel (%p212) target = $region24
      $region23: #{neural_network_mod_forward.1} parent=11 // pred_region
        _
      $region24: #{neural_network_mod_forward.1} parent=11 // pred_fallthru
        _
      // Predicated region
      $region25: #{neural_network_mod_forward.1} parent=11 // pred_check
        %p215 = pneg %p123
      $region26: #{neural_network_mod_forward.1} parent=11 // pred_check_branch
        %217 = sbr.rel (%p215) target = $region28
      $region27: #{neural_network_mod_forward.1} parent=11 // pred_region
        _
      $region28: #{neural_network_mod_forward.1} parent=11 // pred_fallthru
        _
      // Predicated region
      $region29: #{neural_network_mod_forward.1} parent=11 // pred_check
        %p218 = pneg %p144
      $region30: #{neural_network_mod_forward.1} parent=11 // pred_check_branch
        %220 = sbr.rel (%p218) target = $region32
      $region31: #{neural_network_mod_forward.1} parent=11 // pred_region
        _
      $region32: #{neural_network_mod_forward.1} parent=11 // pred_fallthru
        _
      // Predicated region
      $region33: #{neural_network_mod_forward.1} parent=11 // pred_check
        %p221 = pneg %p165
      $region34: #{neural_network_mod_forward.1} parent=11 // pred_check_branch
        %223 = sbr.rel (%p221) target = $region36
      $region35: #{neural_network_mod_forward.1} parent=11 // pred_region
        _
      $region36: #{neural_network_mod_forward.1} parent=11 // pred_fallthru
        _
    $region12: #{neural_network_mod_forward.1} parent=5 // pred_fallthru
      _
    %p224 = scmp.lt.s32.totalorder %s13, 2
    // Predicated region
    $region37: #{neural_network_mod_forward.1} parent=5 // pred_check
      %p225 = pneg %p224
    $region38: #{neural_network_mod_forward.1} parent=5 // pred_check_branch
      %227 = sbr.rel (%p225) target = $region40
    $region39: #{neural_network_mod_forward.1} parent=5 // pred_region
      // Predicated region
      $region41: #{neural_network_mod_forward.1} parent=39 // pred_check
        %p228 = pneg %p33
      $region42: #{neural_network_mod_forward.1} parent=39 // pred_check_branch
        %230 = sbr.rel (%p228) target = $region44
      $region43: #{neural_network_mod_forward.1} parent=39 // pred_region
        %s231 = smul.u32 32, %s13
        %p232 = scmp.lt.s32.totalorder %s231, 63
        %s233 = scalar_select %p232, %s231, 63
        %s234 = smul.addr %s233, 2
        %s235 = smul.addr %s234, 8
        %s236 = scalar_lea.vmem %s0, %s235
        %s237 = smul.u32 32, %s13
      $region44: #{neural_network_mod_forward.1} parent=39 // pred_fallthru
        _
    $region40: #{neural_network_mod_forward.1} parent=5 // pred_fallthru
      _
    %p238 = scmp.le.s32.totalorder 1, %s13
    %p239 = scmp.lt.s32.totalorder %s13, 3
    %p240 = pnand %p238, %p239
    %p241 = pneg %p240
    // Predicated region
    $region45: #{neural_network_mod_forward.1} parent=5 // pred_check
      _
    $region46: #{neural_network_mod_forward.1} parent=5 // pred_check_branch
      %243 = sbr.rel (%p240) target = $region48
    $region47: #{neural_network_mod_forward.1} parent=5 // pred_region
      %s244 = ssub.s32 %s13, 1
      %s245 = smul.u32 32, %s18
      %p246 = scmp.lt.s32.totalorder %s245, 63
      %s247 = scalar_select %p246, %s245, 63
      %s248 = smul.addr %s247, 2
      %s249 = smul.addr %s248, 8
      %s250 = scalar_lea.vmem %s0, %s249
      %p251 = pneg %p39
      %p252 = pneg %p36
      %p253 = pneg %p60
      %p254 = pneg %p57
      %p255 = pneg %p81
      %p256 = pneg %p78
      %p257 = pneg %p102
      %p258 = pneg %p99
      %p259 = pneg %p123
      %p260 = pneg %p120
      %p261 = pneg %p144
      %p262 = pneg %p141
      %p263 = pneg %p165
      %p264 = pneg %p162
      %p265 = pneg %p191
      %p266 = pneg %p188
      %s267 = smul.u32 32, %s18
      %p268 = scmp.lt.s32.totalorder %s267, 63
      %s269 = scalar_select %p268, %s267, 63
      %s270 = smul.addr %s269, 8
      %s271 = scalar_lea.vmem %s7, %s270
      %s272 = smul.u32 32, %s18
      %p273 = scmp.lt.s32.totalorder %s272, 63
      %s274 = scalar_select %p273, %s272, 63
      %s275 = smul.addr %s274, 2
      %s276 = smul.addr %s275, 8
      %s277 = scalar_lea.vmem %s0, %s276
      %s278 = smul.u32 32, %s18
      %s279 = smul.u32 32, %s18
      %p280 = scmp.lt.s32.totalorder %s279, 63
      %s281 = scalar_select %p280, %s279, 63
      %s282 = smul.addr %s281, 8
      %s283 = scalar_lea.vmem %s7, %s282
      %s284 = smul.u32 32, %s18
      %v285 = vld [vmem:[%s277] sm:$0xff]
      %v286 = vld [vmem:[%s277 + $0x8] sm:$0xff]
      %v287 = vld [vmem:[%s277 + $0x10] sm:$0xff]
      %v288 = vld [vmem:[%s277 + $0x18] sm:$0xff]
      %v289 = vld [vmem:[%s277 + $0x20] sm:$0xff]
      %v290 = vld [vmem:[%s277 + $0x28] sm:$0xff]
      %v291 = vld [vmem:[%s277 + $0x30] sm:$0xff]
      %v292 = vld [vmem:[%s277 + $0x38] sm:$0xff]
      %v293 = vld [vmem:[%s277 + $0x40] sm:$0xff]
      %v294 = vld [vmem:[%s277 + $0x48] sm:$0xff]
      %v295 = vld [vmem:[%s277 + $0x50] sm:$0xff]
      %v296 = vld [vmem:[%s277 + $0x58] sm:$0xff]
      %v297 = vld [vmem:[%s277 + $0x60] sm:$0xff]
      %v298 = vld [vmem:[%s277 + $0x68] sm:$0xff]
      %v299 = vld [vmem:[%s277 + $0x70] sm:$0xff]
      %v300 = vld [vmem:[%s277 + $0x78] sm:$0xff]
      %v301 = vld [vmem:[%s277 + $0x80] sm:$0xff]
      %v302 = vld [vmem:[%s277 + $0x88] sm:$0xff]
      %v303 = vld [vmem:[%s277 + $0x90] sm:$0xff]
      %v304 = vld [vmem:[%s277 + $0x98] sm:$0xff]
      %v305 = vld [vmem:[%s277 + $0xa0] sm:$0xff]
      %v306 = vld [vmem:[%s277 + $0xa8] sm:$0xff]
      %v307 = vld [vmem:[%s277 + $0xb0] sm:$0xff]
      %v308 = vld [vmem:[%s277 + $0xb8] sm:$0xff]
      %v309 = vld [vmem:[%s277 + $0xc0] sm:$0xff]
      %v310 = vld [vmem:[%s277 + $0xc8] sm:$0xff]
      %v311 = vld [vmem:[%s277 + $0xd0] sm:$0xff]
      %v312 = vld [vmem:[%s277 + $0xd8] sm:$0xff]
      %v313 = vld [vmem:[%s277 + $0xe0] sm:$0xff]
      %v314 = vld [vmem:[%s277 + $0xe8] sm:$0xff]
      %v315 = vld [vmem:[%s277 + $0xf0] sm:$0xff]
      %v316 = vld [vmem:[%s277 + $0xf8] sm:$0xff]
      %v317 = vld [vmem:[%s277 + $0x100] sm:$0xff]
      %v318 = vld [vmem:[%s277 + $0x108] sm:$0xff]
      %v319 = vld [vmem:[%s277 + $0x110] sm:$0xff]
      %v320 = vld [vmem:[%s277 + $0x118] sm:$0xff]
      %v321 = vld [vmem:[%s277 + $0x120] sm:$0xff]
      %v322 = vld [vmem:[%s277 + $0x128] sm:$0xff]
      %v323 = vld [vmem:[%s277 + $0x130] sm:$0xff]
      %v324 = vld [vmem:[%s277 + $0x138] sm:$0xff]
      %v325 = vld [vmem:[%s277 + $0x140] sm:$0xff]
      %v326 = vld [vmem:[%s277 + $0x148] sm:$0xff]
      %v327 = vld [vmem:[%s277 + $0x150] sm:$0xff]
      %v328 = vld [vmem:[%s277 + $0x158] sm:$0xff]
      %v329 = vld [vmem:[%s277 + $0x160] sm:$0xff]
      %v330 = vld [vmem:[%s277 + $0x168] sm:$0xff]
      %v331 = vld [vmem:[%s277 + $0x170] sm:$0xff]
      %v332 = vld [vmem:[%s277 + $0x178] sm:$0xff]
      %v333 = vld [vmem:[%s277 + $0x180] sm:$0xff]
      %v334 = vld [vmem:[%s277 + $0x188] sm:$0xff]
      %v335 = vld [vmem:[%s277 + $0x190] sm:$0xff]
      %v336 = vld [vmem:[%s277 + $0x198] sm:$0xff]
      %v337 = vld [vmem:[%s277 + $0x1a0] sm:$0xff]
      %v338 = vld [vmem:[%s277 + $0x1a8] sm:$0xff]
      %v339 = vld [vmem:[%s277 + $0x1b0] sm:$0xff]
      %v340 = vld [vmem:[%s277 + $0x1b8] sm:$0xff]
      %v341 = vld [vmem:[%s277 + $0x1c0] sm:$0xff]
      %v342 = vld [vmem:[%s277 + $0x1c8] sm:$0xff]
      %v343 = vld [vmem:[%s277 + $0x1d0] sm:$0xff]
      %v344 = vld [vmem:[%s277 + $0x1d8] sm:$0xff]
      %v345 = vld [vmem:[%s277 + $0x1e0] sm:$0xff]
      %v346 = vld [vmem:[%s277 + $0x1e8] sm:$0xff]
      %v347 = vld [vmem:[%s277 + $0x1f0] sm:$0xff]
      %v348 = vld [vmem:[%s277 + $0x1f8] sm:$0xff]
      %v349 = vld [vmem:[%s1] sm:$0xff]
      %v350 = vld [vmem:[%s1 + $0x8] sm:$0xff]
      %v351 = vld [vmem:[%s1 + $0x10] sm:$0xff]
      %v352 = vld [vmem:[%s1 + $0x18] sm:$0xff]
      %v353 = vld [vmem:[%s1 + $0x20] sm:$0xff]
      %v354 = vld [vmem:[%s1 + $0x28] sm:$0xff]
      %v355 = vld [vmem:[%s1 + $0x30] sm:$0xff]
      %v356 = vld [vmem:[%s1 + $0x38] sm:$0xff]
      %v357 = vld [vmem:[%s1 + $0x40] sm:$0xff]
      %v358 = vld [vmem:[%s1 + $0x48] sm:$0xff]
      %v359 = vld [vmem:[%s1 + $0x50] sm:$0xff]
      %v360 = vld [vmem:[%s1 + $0x58] sm:$0xff]
      %v361 = vld [vmem:[%s1 + $0x60] sm:$0xff]
      %v362 = vld [vmem:[%s1 + $0x68] sm:$0xff]
      %v363 = vld [vmem:[%s1 + $0x70] sm:$0xff]
      %v364 = vld [vmem:[%s1 + $0x78] sm:$0xff]
      %v365 = vld [vmem:[%s1 + $0x80] sm:$0xff]
      %v366 = vld [vmem:[%s1 + $0x88] sm:$0xff]
      %v367 = vld [vmem:[%s1 + $0x90] sm:$0xff]
      %v368 = vld [vmem:[%s1 + $0x98] sm:$0xff]
      %v369 = vld [vmem:[%s1 + $0xa0] sm:$0xff]
      %v370 = vld [vmem:[%s1 + $0xa8] sm:$0xff]
      %v371 = vld [vmem:[%s1 + $0xb0] sm:$0xff]
      %v372 = vld [vmem:[%s1 + $0xb8] sm:$0xff]
      %v373 = vld [vmem:[%s1 + $0xc0] sm:$0xff]
      %v374 = vld [vmem:[%s1 + $0xc8] sm:$0xff]
      %v375 = vld [vmem:[%s1 + $0xd0] sm:$0xff]
      %v376 = vld [vmem:[%s1 + $0xd8] sm:$0xff]
      %v377 = vld [vmem:[%s1 + $0xe0] sm:$0xff]
      %v378 = vld [vmem:[%s1 + $0xe8] sm:$0xff]
      %v379 = vld [vmem:[%s1 + $0xf0] sm:$0xff]
      %v380 = vld [vmem:[%s1 + $0xf8] sm:$0xff]
      %v381 = vld [vmem:[%s2] sm:$0x1]
      %v383 = vlaneseq
      %v384 = vshrl.u32 %v383, 7
      %v385 = vsub.s32 0, %v384
      %v386 = vrot.slane %v381, %v385
      %388 = vmatprep.subr.mxu0 0.0
      %389 = vmatpush1.msra.mxu0 %v349
      %390 = vmatprep.subr.mxu0 0.0
      %391 = vmatpush1.msra.mxu0 %v350
      %392 = vmatprep.subr.mxu0 0.0
      %393 = vmatpush1.msra.mxu0 %v351
      %394 = vmatprep.subr.mxu0 0.0
      %395 = vmatpush1.msra.mxu0 %v352
      %396 = vmatprep.subr.mxu0 0.0
      %397 = vmatpush1.msra.mxu0 %v353
      %398 = vmatprep.subr.mxu0 0.0
      %399 = vmatpush1.msra.mxu0 %v354
      %400 = vmatprep.subr.mxu0 0.0
      %401 = vmatpush1.msra.mxu0 %v355
      %402 = vmatprep.subr.mxu0 0.0
      %403 = vmatpush1.msra.mxu0 %v356
      %404 = vmatprep.subr.mxu0 0.0
      %405 = vmatpush1.msra.mxu0 %v357
      %406 = vmatprep.subr.mxu0 0.0
      %407 = vmatpush1.msra.mxu0 %v358
      %408 = vmatprep.subr.mxu0 0.0
      %409 = vmatpush1.msra.mxu0 %v359
      %410 = vmatprep.subr.mxu0 0.0
      %411 = vmatpush1.msra.mxu0 %v360
      %412 = vmatprep.subr.mxu0 0.0
      %413 = vmatpush1.msra.mxu0 %v361
      %414 = vmatprep.subr.mxu0 0.0
      %415 = vmatpush1.msra.mxu0 %v362
      %416 = vmatprep.subr.mxu0 0.0
      %417 = vmatpush1.msra.mxu0 %v363
      %418 = vmatprep.subr.mxu0 0.0
      %419 = vmatpush1.msra.mxu0 %v364
      %420 = vmatprep.subr.mxu0 0.0
      %421 = vmatpush1.msra.mxu0 %v365
      %422 = vmatprep.subr.mxu0 0.0
      %423 = vmatpush1.msra.mxu0 %v366
      %424 = vmatprep.subr.mxu0 0.0
      %425 = vmatpush1.msra.mxu0 %v367
      %426 = vmatprep.subr.mxu0 0.0
      %427 = vmatpush1.msra.mxu0 %v368
      %428 = vmatprep.subr.mxu0 0.0
      %429 = vmatpush1.msra.mxu0 %v369
      %430 = vmatprep.subr.mxu0 0.0
      %431 = vmatpush1.msra.mxu0 %v370
      %432 = vmatprep.subr.mxu0 0.0
      %433 = vmatpush1.msra.mxu0 %v371
      %434 = vmatprep.subr.mxu0 0.0
      %435 = vmatpush1.msra.mxu0 %v372
      %436 = vmatprep.subr.mxu0 0.0
      %437 = vmatpush1.msra.mxu0 %v373
      %438 = vmatprep.subr.mxu0 0.0
      %439 = vmatpush1.msra.mxu0 %v374
      %440 = vmatprep.subr.mxu0 0.0
      %441 = vmatpush1.msra.mxu0 %v375
      %442 = vmatprep.subr.mxu0 0.0
      %443 = vmatpush1.msra.mxu0 %v376
      %444 = vmatprep.subr.mxu0 0.0
      %445 = vmatpush1.msra.mxu0 %v377
      %446 = vmatprep.subr.mxu0 0.0
      %447 = vmatpush1.msra.mxu0 %v378
      %448 = vmatprep.subr.mxu0 0.0
      %449 = vmatpush1.msra.mxu0 %v379
      %450 = vmatprep.subr.mxu0 0.0
      %451 = vmatpush1.msra.mxu0 %v380
      %452 = vmatprep.mubr.f32.mxu0 %v286
      %453 = vmatmul.mubr.f32.gmra.mrb[0].mxu0 %v285
      %v454 = vpop.f32.mrb[0].mxu0
      %v455 = vadd.f32 %v386, %v454
      %v456 = vpop.f32.mrb[0].mxu0
      %457 = vmatprep.mubr.f32.mxu0 %v288
      %458 = vmatmul.mubr.f32.gmra.mrb[0].mxu0 %v287
      %v459 = vpop.f32.mrb[0].mxu0
      %v460 = vadd.f32 %v386, %v459
      %v461 = vpop.f32.mrb[0].mxu0
      %462 = vmatprep.mubr.f32.mxu0 %v290
      %463 = vmatmul.mubr.f32.gmra.mrb[0].mxu0 %v289
      %v464 = vpop.f32.mrb[0].mxu0
      %v465 = vadd.f32 %v386, %v464
      %v466 = vpop.f32.mrb[0].mxu0
      %467 = vmatprep.mubr.f32.mxu0 %v292
      %468 = vmatmul.mubr.f32.gmra.mrb[0].mxu0 %v291
      %v469 = vpop.f32.mrb[0].mxu0
      %v470 = vadd.f32 %v386, %v469
      %v471 = vpop.f32.mrb[0].mxu0
      %472 = vmatprep.mubr.f32.mxu0 %v294
      %473 = vmatmul.mubr.f32.gmra.mrb[0].mxu0 %v293
      %v474 = vpop.f32.mrb[0].mxu0
      %v475 = vadd.f32 %v386, %v474
      %v476 = vpop.f32.mrb[0].mxu0
      %477 = vmatprep.mubr.f32.mxu0 %v296
      %478 = vmatmul.mubr.f32.gmra.mrb[0].mxu0 %v295
      %v479 = vpop.f32.mrb[0].mxu0
      %v480 = vadd.f32 %v386, %v479
      %v481 = vpop.f32.mrb[0].mxu0
      %482 = vmatprep.mubr.f32.mxu0 %v298
      %483 = vmatmul.mubr.f32.gmra.mrb[0].mxu0 %v297
      %v484 = vpop.f32.mrb[0].mxu0
      %v485 = vadd.f32 %v386, %v484
      %v486 = vpop.f32.mrb[0].mxu0
      %487 = vmatprep.mubr.f32.mxu0 %v300
      %488 = vmatmul.mubr.f32.gmra.mrb[0].mxu0 %v299
      %v489 = vpop.f32.mrb[0].mxu0
      %v490 = vadd.f32 %v386, %v489
      %v491 = vpop.f32.mrb[0].mxu0
      %492 = vmatprep.mubr.f32.mxu0 %v302
      %493 = vmatmul.mubr.f32.gmra.mrb[0].mxu0 %v301
      %v494 = vpop.f32.mrb[0].mxu0
      %v495 = vadd.f32 %v386, %v494
      %v496 = vpop.f32.mrb[0].mxu0
      %497 = vmatprep.mubr.f32.mxu0 %v304
      %498 = vmatmul.mubr.f32.gmra.mrb[0].mxu0 %v303
      %v499 = vpop.f32.mrb[0].mxu0
      %v500 = vadd.f32 %v386, %v499
      %v501 = vpop.f32.mrb[0].mxu0
      %502 = vmatprep.mubr.f32.mxu0 %v306
      %503 = vmatmul.mubr.f32.gmra.mrb[0].mxu0 %v305
      %v504 = vpop.f32.mrb[0].mxu0
      %v505 = vadd.f32 %v386, %v504
      %v506 = vpop.f32.mrb[0].mxu0
      %507 = vmatprep.mubr.f32.mxu0 %v308
      %508 = vmatmul.mubr.f32.gmra.mrb[0].mxu0 %v307
      %v509 = vpop.f32.mrb[0].mxu0
      %v510 = vadd.f32 %v386, %v509
      %v511 = vpop.f32.mrb[0].mxu0
      %512 = vmatprep.mubr.f32.mxu0 %v310
      %513 = vmatmul.mubr.f32.gmra.mrb[0].mxu0 %v309
      %v514 = vpop.f32.mrb[0].mxu0
      %v515 = vadd.f32 %v386, %v514
      %v516 = vpop.f32.mrb[0].mxu0
      %517 = vmatprep.mubr.f32.mxu0 %v312
      %518 = vmatmul.mubr.f32.gmra.mrb[0].mxu0 %v311
      %v519 = vpop.f32.mrb[0].mxu0
      %v520 = vadd.f32 %v386, %v519
      %v521 = vpop.f32.mrb[0].mxu0
      %522 = vmatprep.mubr.f32.mxu0 %v314
      %523 = vmatmul.mubr.f32.gmra.mrb[0].mxu0 %v313
      %v524 = vpop.f32.mrb[0].mxu0
      %v525 = vadd.f32 %v386, %v524
      %v526 = vpop.f32.mrb[0].mxu0
      %527 = vmatprep.mubr.f32.mxu0 %v316
      %528 = vmatmul.mubr.f32.gmra.mrb[0].mxu0 %v315
      %v529 = vpop.f32.mrb[0].mxu0
      %v530 = vadd.f32 %v386, %v529
      %v531 = vpop.f32.mrb[0].mxu0
      %532 = vmatprep.mubr.f32.mxu0 %v318
      %533 = vmatmul.mubr.f32.gmra.mrb[0].mxu0 %v317
      %v534 = vpop.f32.mrb[0].mxu0
      %v535 = vadd.f32 %v386, %v534
      %v536 = vpop.f32.mrb[0].mxu0
      %537 = vmatprep.mubr.f32.mxu0 %v320
      %538 = vmatmul.mubr.f32.gmra.mrb[0].mxu0 %v319
      %v539 = vpop.f32.mrb[0].mxu0
      %v540 = vadd.f32 %v386, %v539
      %v541 = vpop.f32.mrb[0].mxu0
      %542 = vmatprep.mubr.f32.mxu0 %v322
      %543 = vmatmul.mubr.f32.gmra.mrb[0].mxu0 %v321
      %v544 = vpop.f32.mrb[0].mxu0
      %v545 = vadd.f32 %v386, %v544
      %v546 = vpop.f32.mrb[0].mxu0
      %547 = vmatprep.mubr.f32.mxu0 %v324
      %548 = vmatmul.mubr.f32.gmra.mrb[0].mxu0 %v323
      %v549 = vpop.f32.mrb[0].mxu0
      %v550 = vadd.f32 %v386, %v549
      %v551 = vpop.f32.mrb[0].mxu0
      %552 = vmatprep.mubr.f32.mxu0 %v326
      %553 = vmatmul.mubr.f32.gmra.mrb[0].mxu0 %v325
      %v554 = vpop.f32.mrb[0].mxu0
      %v555 = vadd.f32 %v386, %v554
      %v556 = vpop.f32.mrb[0].mxu0
      %557 = vmatprep.mubr.f32.mxu0 %v328
      %558 = vmatmul.mubr.f32.gmra.mrb[0].mxu0 %v327
      %v559 = vpop.f32.mrb[0].mxu0
      %v560 = vadd.f32 %v386, %v559
      %v561 = vpop.f32.mrb[0].mxu0
      %562 = vmatprep.mubr.f32.mxu0 %v330
      %563 = vmatmul.mubr.f32.gmra.mrb[0].mxu0 %v329
      %v564 = vpop.f32.mrb[0].mxu0
      %v565 = vadd.f32 %v386, %v564
      %v566 = vpop.f32.mrb[0].mxu0
      %567 = vmatprep.mubr.f32.mxu0 %v332
      %568 = vmatmul.mubr.f32.gmra.mrb[0].mxu0 %v331
      %v569 = vpop.f32.mrb[0].mxu0
      %v570 = vadd.f32 %v386, %v569
      %v571 = vpop.f32.mrb[0].mxu0
      %572 = vmatprep.mubr.f32.mxu0 %v334
      %573 = vmatmul.mubr.f32.gmra.mrb[0].mxu0 %v333
      %v574 = vpop.f32.mrb[0].mxu0
      %v575 = vadd.f32 %v386, %v574
      %v576 = vpop.f32.mrb[0].mxu0
      %577 = vmatprep.mubr.f32.mxu0 %v336
      %578 = vmatmul.mubr.f32.gmra.mrb[0].mxu0 %v335
      %v579 = vpop.f32.mrb[0].mxu0
      %v580 = vadd.f32 %v386, %v579
      %v581 = vpop.f32.mrb[0].mxu0
      %582 = vmatprep.mubr.f32.mxu0 %v338
      %583 = vmatmul.mubr.f32.gmra.mrb[0].mxu0 %v337
      %v584 = vpop.f32.mrb[0].mxu0
      %v585 = vadd.f32 %v386, %v584
      %v586 = vpop.f32.mrb[0].mxu0
      %587 = vmatprep.mubr.f32.mxu0 %v340
      %588 = vmatmul.mubr.f32.gmra.mrb[0].mxu0 %v339
      %v589 = vpop.f32.mrb[0].mxu0
      %v590 = vadd.f32 %v386, %v589
      %v591 = vpop.f32.mrb[0].mxu0
      %592 = vmatprep.mubr.f32.mxu0 %v342
      %593 = vmatmul.mubr.f32.gmra.mrb[0].mxu0 %v341
      %v594 = vpop.f32.mrb[0].mxu0
      %v595 = vadd.f32 %v386, %v594
      %v596 = vpop.f32.mrb[0].mxu0
      %597 = vmatprep.mubr.f32.mxu0 %v344
      %598 = vmatmul.mubr.f32.gmra.mrb[0].mxu0 %v343
      %v599 = vpop.f32.mrb[0].mxu0
      %v600 = vadd.f32 %v386, %v599
      %v601 = vpop.f32.mrb[0].mxu0
      %602 = vmatprep.mubr.f32.mxu0 %v346
      %603 = vmatmul.mubr.f32.gmra.mrb[0].mxu0 %v345
      %v604 = vpop.f32.mrb[0].mxu0
      %v605 = vadd.f32 %v386, %v604
      %v606 = vpop.f32.mrb[0].mxu0
      %607 = vmatprep.mubr.f32.mxu0 %v348
      %608 = vmatmul.mubr.f32.gmra.mrb[0].mxu0 %v347
      %v609 = vpop.f32.mrb[0].mxu0
      %v610 = vadd.f32 %v386, %v609
      %v611 = vpop.f32.mrb[0].mxu0
      %612 = vdwg.mxu0
      %v613 = vtanh.pop %v455
      %v614 = vtanh.pop %v460
      %v615 = vtanh.pop %v465
      %v616 = vtanh.pop %v470
      %v617 = vtanh.pop %v475
      %v618 = vtanh.pop %v480
      %v619 = vtanh.pop %v485
      %v620 = vtanh.pop %v490
      %v621 = vtanh.pop %v495
      %v622 = vtanh.pop %v500
      %v623 = vtanh.pop %v505
      %v624 = vtanh.pop %v510
      %v625 = vtanh.pop %v515
      %v626 = vtanh.pop %v520
      %v627 = vtanh.pop %v525
      %v628 = vtanh.pop %v530
      %v629 = vtanh.pop %v535
      %v630 = vtanh.pop %v540
      %v631 = vtanh.pop %v545
      %v632 = vtanh.pop %v550
      %v633 = vtanh.pop %v555
      %v634 = vtanh.pop %v560
      %v635 = vtanh.pop %v565
      %v636 = vtanh.pop %v570
      %v637 = vtanh.pop %v575
      %v638 = vtanh.pop %v580
      %v639 = vtanh.pop %v585
      %v640 = vtanh.pop %v590
      %v641 = vtanh.pop %v595
      %v642 = vtanh.pop %v600
      %v643 = vtanh.pop %v605
      %v644 = vtanh.pop %v610
      %v645 = vld [vmem:[%s3] sm:$0xff]
      %v646 = vld [vmem:[%s3 + $0x8] sm:$0xff]
      %v647 = vld [vmem:[%s3 + $0x10] sm:$0xff]
      %v648 = vld [vmem:[%s3 + $0x18] sm:$0xff]
      %v649 = vld [vmem:[%s3 + $0x20] sm:$0xff]
      %v650 = vld [vmem:[%s3 + $0x28] sm:$0xff]
      %v651 = vld [vmem:[%s3 + $0x30] sm:$0xff]
      %v652 = vld [vmem:[%s3 + $0x38] sm:$0xff]
      %v653 = vld [vmem:[%s3 + $0x40] sm:$0xff]
      %v654 = vld [vmem:[%s3 + $0x48] sm:$0xff]
      %v655 = vld [vmem:[%s3 + $0x50] sm:$0xff]
      %v656 = vld [vmem:[%s3 + $0x58] sm:$0xff]
      %v657 = vld [vmem:[%s3 + $0x60] sm:$0xff]
      %v658 = vld [vmem:[%s3 + $0x68] sm:$0xff]
      %v659 = vld [vmem:[%s3 + $0x70] sm:$0xff]
      %v660 = vld [vmem:[%s3 + $0x78] sm:$0xff]
      %v661 = vld [vmem:[%s4] sm:$0x1]
      %v663 = vlaneseq
      %v664 = vshrl.u32 %v663, 7
      %v665 = vsub.s32 0, %v664
      %v666 = vrot.slane %v661, %v665
      %668 = vmatprep.subr.mxu0 0.0
      %669 = vmatpush1.msra.mxu0 %v645
      %670 = vmatprep.subr.mxu0 0.0
      %671 = vmatpush1.msra.mxu0 %v646
      %672 = vmatprep.subr.mxu0 0.0
      %673 = vmatpush1.msra.mxu0 %v647
      %674 = vmatprep.subr.mxu0 0.0
      %675 = vmatpush1.msra.mxu0 %v648
      %676 = vmatprep.subr.mxu0 0.0
      %677 = vmatpush1.msra.mxu0 %v649
      %678 = vmatprep.subr.mxu0 0.0
      %679 = vmatpush1.msra.mxu0 %v650
      %680 = vmatprep.subr.mxu0 0.0
      %681 = vmatpush1.msra.mxu0 %v651
      %682 = vmatprep.subr.mxu0 0.0
      %683 = vmatpush1.msra.mxu0 %v652
      %684 = vmatprep.subr.mxu0 0.0
      %685 = vmatpush1.msra.mxu0 %v653
      %686 = vmatprep.subr.mxu0 0.0
      %687 = vmatpush1.msra.mxu0 %v654
      %688 = vmatprep.subr.mxu0 0.0
      %689 = vmatpush1.msra.mxu0 %v655
      %690 = vmatprep.subr.mxu0 0.0
      %691 = vmatpush1.msra.mxu0 %v656
      %692 = vmatprep.subr.mxu0 0.0
      %693 = vmatpush1.msra.mxu0 %v657
      %694 = vmatprep.subr.mxu0 0.0
      %695 = vmatpush1.msra.mxu0 %v658
      %696 = vmatprep.subr.mxu0 0.0
      %697 = vmatpush1.msra.mxu0 %v659
      %698 = vmatprep.subr.mxu0 0.0
      %699 = vmatpush1.msra.mxu0 %v660
      %700 = vmatprep.subr.mxu0 0.0
      %701 = vmatpush1.msra.mxu0 0.0
      %702 = vmatprep.subr.mxu0 0.0
      %703 = vmatpush1.msra.mxu0 0.0
      %704 = vmatprep.subr.mxu0 0.0
      %705 = vmatpush1.msra.mxu0 0.0
      %706 = vmatprep.subr.mxu0 0.0
      %707 = vmatpush1.msra.mxu0 0.0
      %708 = vmatprep.subr.mxu0 0.0
      %709 = vmatpush1.msra.mxu0 0.0
      %710 = vmatprep.subr.mxu0 0.0
      %711 = vmatpush1.msra.mxu0 0.0
      %712 = vmatprep.subr.mxu0 0.0
      %713 = vmatpush1.msra.mxu0 0.0
      %714 = vmatprep.subr.mxu0 0.0
      %715 = vmatpush1.msra.mxu0 0.0
      %716 = vmatprep.subr.mxu0 0.0
      %717 = vmatpush1.msra.mxu0 0.0
      %718 = vmatprep.subr.mxu0 0.0
      %719 = vmatpush1.msra.mxu0 0.0
      %720 = vmatprep.subr.mxu0 0.0
      %721 = vmatpush1.msra.mxu0 0.0
      %722 = vmatprep.subr.mxu0 0.0
      %723 = vmatpush1.msra.mxu0 0.0
      %724 = vmatprep.subr.mxu0 0.0
      %725 = vmatpush1.msra.mxu0 0.0
      %726 = vmatprep.subr.mxu0 0.0
      %727 = vmatpush1.msra.mxu0 0.0
      %728 = vmatprep.subr.mxu0 0.0
      %729 = vmatpush1.msra.mxu0 0.0
      %730 = vmatprep.subr.mxu0 0.0
      %731 = vmatpush1.msra.mxu0 0.0
      %732 = vmatprep.mubr.f32.mxu0 0.0
      %733 = vmatmul.mubr.f32.gmra.mrb[0].mxu0 %v613
      %v734 = vpop.f32.mrb[0].mxu0
      %v735 = vadd.f32 %v666, %v734
      %v736 = vpop.f32.mrb[0].mxu0
      %737 = vmatprep.mubr.f32.mxu0 0.0
      %738 = vmatmul.mubr.f32.gmra.mrb[0].mxu0 %v614
      %v739 = vpop.f32.mrb[0].mxu0
      %v740 = vadd.f32 %v666, %v739
      %v741 = vpop.f32.mrb[0].mxu0
      %742 = vmatprep.mubr.f32.mxu0 0.0
      %743 = vmatmul.mubr.f32.gmra.mrb[0].mxu0 %v615
      %v744 = vpop.f32.mrb[0].mxu0
      %v745 = vadd.f32 %v666, %v744
      %v746 = vpop.f32.mrb[0].mxu0
      %747 = vmatprep.mubr.f32.mxu0 0.0
      %748 = vmatmul.mubr.f32.gmra.mrb[0].mxu0 %v616
      %v749 = vpop.f32.mrb[0].mxu0
      %v750 = vadd.f32 %v666, %v749
      %v751 = vpop.f32.mrb[0].mxu0
      %752 = vmatprep.mubr.f32.mxu0 0.0
      %753 = vmatmul.mubr.f32.gmra.mrb[0].mxu0 %v617
      %v754 = vpop.f32.mrb[0].mxu0
      %v755 = vadd.f32 %v666, %v754
      %v756 = vpop.f32.mrb[0].mxu0
      %757 = vmatprep.mubr.f32.mxu0 0.0
      %758 = vmatmul.mubr.f32.gmra.mrb[0].mxu0 %v618
      %v759 = vpop.f32.mrb[0].mxu0
      %v760 = vadd.f32 %v666, %v759
      %v761 = vpop.f32.mrb[0].mxu0
      %762 = vmatprep.mubr.f32.mxu0 0.0
      %763 = vmatmul.mubr.f32.gmra.mrb[0].mxu0 %v619
      %v764 = vpop.f32.mrb[0].mxu0
      %v765 = vadd.f32 %v666, %v764
      %v766 = vpop.f32.mrb[0].mxu0
      %767 = vmatprep.mubr.f32.mxu0 0.0
      %768 = vmatmul.mubr.f32.gmra.mrb[0].mxu0 %v620
      %v769 = vpop.f32.mrb[0].mxu0
      %v770 = vadd.f32 %v666, %v769
      %v771 = vpop.f32.mrb[0].mxu0
      %772 = vmatprep.mubr.f32.mxu0 0.0
      %773 = vmatmul.mubr.f32.gmra.mrb[0].mxu0 %v621
      %v774 = vpop.f32.mrb[0].mxu0
      %v775 = vadd.f32 %v666, %v774
      %v776 = vpop.f32.mrb[0].mxu0
      %777 = vmatprep.mubr.f32.mxu0 0.0
      %778 = vmatmul.mubr.f32.gmra.mrb[0].mxu0 %v622
      %v779 = vpop.f32.mrb[0].mxu0
      %v780 = vadd.f32 %v666, %v779
      %v781 = vpop.f32.mrb[0].mxu0
      %782 = vmatprep.mubr.f32.mxu0 0.0
      %783 = vmatmul.mubr.f32.gmra.mrb[0].mxu0 %v623
      %v784 = vpop.f32.mrb[0].mxu0
      %v785 = vadd.f32 %v666, %v784
      %v786 = vpop.f32.mrb[0].mxu0
      %787 = vmatprep.mubr.f32.mxu0 0.0
      %788 = vmatmul.mubr.f32.gmra.mrb[0].mxu0 %v624
      %v789 = vpop.f32.mrb[0].mxu0
      %v790 = vadd.f32 %v666, %v789
      %v791 = vpop.f32.mrb[0].mxu0
      %792 = vmatprep.mubr.f32.mxu0 0.0
      %793 = vmatmul.mubr.f32.gmra.mrb[0].mxu0 %v625
      %v794 = vpop.f32.mrb[0].mxu0
      %v795 = vadd.f32 %v666, %v794
      %v796 = vpop.f32.mrb[0].mxu0
      %797 = vmatprep.mubr.f32.mxu0 0.0
      %798 = vmatmul.mubr.f32.gmra.mrb[0].mxu0 %v626
      %v799 = vpop.f32.mrb[0].mxu0
      %v800 = vadd.f32 %v666, %v799
      %v801 = vpop.f32.mrb[0].mxu0
      %802 = vmatprep.mubr.f32.mxu0 0.0
      %803 = vmatmul.mubr.f32.gmra.mrb[0].mxu0 %v627
      %v804 = vpop.f32.mrb[0].mxu0
      %v805 = vadd.f32 %v666, %v804
      %v806 = vpop.f32.mrb[0].mxu0
      %807 = vmatprep.mubr.f32.mxu0 0.0
      %808 = vmatmul.mubr.f32.gmra.mrb[0].mxu0 %v628
      %v809 = vpop.f32.mrb[0].mxu0
      %v810 = vadd.f32 %v666, %v809
      %v811 = vpop.f32.mrb[0].mxu0
      %812 = vmatprep.mubr.f32.mxu0 0.0
      %813 = vmatmul.mubr.f32.gmra.mrb[0].mxu0 %v629
      %v814 = vpop.f32.mrb[0].mxu0
      %v815 = vadd.f32 %v666, %v814
      %v816 = vpop.f32.mrb[0].mxu0
      %817 = vmatprep.mubr.f32.mxu0 0.0
      %818 = vmatmul.mubr.f32.gmra.mrb[0].mxu0 %v630
      %v819 = vpop.f32.mrb[0].mxu0
      %v820 = vadd.f32 %v666, %v819
      %v821 = vpop.f32.mrb[0].mxu0
      %822 = vmatprep.mubr.f32.mxu0 0.0
      %823 = vmatmul.mubr.f32.gmra.mrb[0].mxu0 %v631
      %v824 = vpop.f32.mrb[0].mxu0
      %v825 = vadd.f32 %v666, %v824
      %v826 = vpop.f32.mrb[0].mxu0
      %827 = vmatprep.mubr.f32.mxu0 0.0
      %828 = vmatmul.mubr.f32.gmra.mrb[0].mxu0 %v632
      %v829 = vpop.f32.mrb[0].mxu0
      %v830 = vadd.f32 %v666, %v829
      %v831 = vpop.f32.mrb[0].mxu0
      %832 = vmatprep.mubr.f32.mxu0 0.0
      %833 = vmatmul.mubr.f32.gmra.mrb[0].mxu0 %v633
      %v834 = vpop.f32.mrb[0].mxu0
      %v835 = vadd.f32 %v666, %v834
      %v836 = vpop.f32.mrb[0].mxu0
      %837 = vmatprep.mubr.f32.mxu0 0.0
      %838 = vmatmul.mubr.f32.gmra.mrb[0].mxu0 %v634
      %v839 = vpop.f32.mrb[0].mxu0
      %v840 = vadd.f32 %v666, %v839
      %v841 = vpop.f32.mrb[0].mxu0
      %842 = vmatprep.mubr.f32.mxu0 0.0
      %843 = vmatmul.mubr.f32.gmra.mrb[0].mxu0 %v635
      %v844 = vpop.f32.mrb[0].mxu0
      %v845 = vadd.f32 %v666, %v844
      %v846 = vpop.f32.mrb[0].mxu0
      %847 = vmatprep.mubr.f32.mxu0 0.0
      %848 = vmatmul.mubr.f32.gmra.mrb[0].mxu0 %v636
      %v849 = vpop.f32.mrb[0].mxu0
      %v850 = vadd.f32 %v666, %v849
      %v851 = vpop.f32.mrb[0].mxu0
      %852 = vmatprep.mubr.f32.mxu0 0.0
      %853 = vmatmul.mubr.f32.gmra.mrb[0].mxu0 %v637
      %v854 = vpop.f32.mrb[0].mxu0
      %v855 = vadd.f32 %v666, %v854
      %v856 = vpop.f32.mrb[0].mxu0
      %857 = vmatprep.mubr.f32.mxu0 0.0
      %858 = vmatmul.mubr.f32.gmra.mrb[0].mxu0 %v638
      %v859 = vpop.f32.mrb[0].mxu0
      %v860 = vadd.f32 %v666, %v859
      %v861 = vpop.f32.mrb[0].mxu0
      %862 = vmatprep.mubr.f32.mxu0 0.0
      %863 = vmatmul.mubr.f32.gmra.mrb[0].mxu0 %v639
      %v864 = vpop.f32.mrb[0].mxu0
      %v865 = vadd.f32 %v666, %v864
      %v866 = vpop.f32.mrb[0].mxu0
      %867 = vmatprep.mubr.f32.mxu0 0.0
      %868 = vmatmul.mubr.f32.gmra.mrb[0].mxu0 %v640
      %v869 = vpop.f32.mrb[0].mxu0
      %v870 = vadd.f32 %v666, %v869
      %v871 = vpop.f32.mrb[0].mxu0
      %872 = vmatprep.mubr.f32.mxu0 0.0
      %873 = vmatmul.mubr.f32.gmra.mrb[0].mxu0 %v641
      %v874 = vpop.f32.mrb[0].mxu0
      %v875 = vadd.f32 %v666, %v874
      %v876 = vpop.f32.mrb[0].mxu0
      %877 = vmatprep.mubr.f32.mxu0 0.0
      %878 = vmatmul.mubr.f32.gmra.mrb[0].mxu0 %v642
      %v879 = vpop.f32.mrb[0].mxu0
      %v880 = vadd.f32 %v666, %v879
      %v881 = vpop.f32.mrb[0].mxu0
      %882 = vmatprep.mubr.f32.mxu0 0.0
      %883 = vmatmul.mubr.f32.gmra.mrb[0].mxu0 %v643
      %v884 = vpop.f32.mrb[0].mxu0
      %v885 = vadd.f32 %v666, %v884
      %v886 = vpop.f32.mrb[0].mxu0
      %887 = vmatprep.mubr.f32.mxu0 0.0
      %888 = vmatmul.mubr.f32.gmra.mrb[0].mxu0 %v644
      %v889 = vpop.f32.mrb[0].mxu0
      %v890 = vadd.f32 %v666, %v889
      %v891 = vpop.f32.mrb[0].mxu0
      %892 = vdwg.mxu0
      %v893 = vtanh.pop %v735
      %v894 = vtanh.pop %v740
      %v895 = vtanh.pop %v745
      %v896 = vtanh.pop %v750
      %v897 = vtanh.pop %v755
      %v898 = vtanh.pop %v760
      %v899 = vtanh.pop %v765
      %v900 = vtanh.pop %v770
      %v901 = vtanh.pop %v775
      %v902 = vtanh.pop %v780
      %v903 = vtanh.pop %v785
      %v904 = vtanh.pop %v790
      %v905 = vtanh.pop %v795
      %v906 = vtanh.pop %v800
      %v907 = vtanh.pop %v805
      %v908 = vtanh.pop %v810
      %v909 = vtanh.pop %v815
      %v910 = vtanh.pop %v820
      %v911 = vtanh.pop %v825
      %v912 = vtanh.pop %v830
      %v913 = vtanh.pop %v835
      %v914 = vtanh.pop %v840
      %v915 = vtanh.pop %v845
      %v916 = vtanh.pop %v850
      %v917 = vtanh.pop %v855
      %v918 = vtanh.pop %v860
      %v919 = vtanh.pop %v865
      %v920 = vtanh.pop %v870
      %v921 = vtanh.pop %v875
      %v922 = vtanh.pop %v880
      %v923 = vtanh.pop %v885
      %v924 = vtanh.pop %v890
      %v925 = vld [vmem:[%s5] sm:$0xff]
      %v926 = vld [vmem:[%s5 + $0x8] sm:$0xff]
      %v927 = vld [vmem:[%s5 + $0x10] sm:$0xff]
      %v928 = vld [vmem:[%s5 + $0x18] sm:$0xff]
      %v929 = vld [vmem:[%s5 + $0x20] sm:$0xff]
      %v930 = vld [vmem:[%s5 + $0x28] sm:$0xff]
      %v931 = vld [vmem:[%s5 + $0x30] sm:$0xff]
      %v932 = vld [vmem:[%s5 + $0x38] sm:$0xff]
      %v933 = vld [vmem:[%s5 + $0x40] sm:$0xff]
      %v934 = vld [vmem:[%s5 + $0x48] sm:$0xff]
      %v935 = vld [vmem:[%s5 + $0x50] sm:$0xff]
      %v936 = vld [vmem:[%s5 + $0x58] sm:$0xff]
      %v937 = vld [vmem:[%s5 + $0x60] sm:$0xff]
      %v938 = vld [vmem:[%s5 + $0x68] sm:$0xff]
      %v939 = vld [vmem:[%s5 + $0x70] sm:$0xff]
      %v940 = vld [vmem:[%s5 + $0x78] sm:$0xff]
      %v941 = vld [vmem:[%s6] sm:$0x1]
      %v943 = vlaneseq
      %v944 = vshrl.u32 %v943, 7
      %v945 = vsub.s32 0, %v944
      %v946 = vrot.slane %v941, %v945
      %948 = vmatprep.subr.mxu0 0.0
      %949 = vmatpush1.msra.mxu0 %v925
      %950 = vmatprep.subr.mxu0 0.0
      %951 = vmatpush1.msra.mxu0 %v926
      %952 = vmatprep.subr.mxu0 0.0
      %953 = vmatpush1.msra.mxu0 %v927
      %954 = vmatprep.subr.mxu0 0.0
      %955 = vmatpush1.msra.mxu0 %v928
      %956 = vmatprep.subr.mxu0 0.0
      %957 = vmatpush1.msra.mxu0 %v929
      %958 = vmatprep.subr.mxu0 0.0
      %959 = vmatpush1.msra.mxu0 %v930
      %960 = vmatprep.subr.mxu0 0.0
      %961 = vmatpush1.msra.mxu0 %v931
      %962 = vmatprep.subr.mxu0 0.0
      %963 = vmatpush1.msra.mxu0 %v932
      %964 = vmatprep.subr.mxu0 0.0
      %965 = vmatpush1.msra.mxu0 %v933
      %966 = vmatprep.subr.mxu0 0.0
      %967 = vmatpush1.msra.mxu0 %v934
      %968 = vmatprep.subr.mxu0 0.0
      %969 = vmatpush1.msra.mxu0 %v935
      %970 = vmatprep.subr.mxu0 0.0
      %971 = vmatpush1.msra.mxu0 %v936
      %972 = vmatprep.subr.mxu0 0.0
      %973 = vmatpush1.msra.mxu0 %v937
      %974 = vmatprep.subr.mxu0 0.0
      %975 = vmatpush1.msra.mxu0 %v938
      %976 = vmatprep.subr.mxu0 0.0
      %977 = vmatpush1.msra.mxu0 %v939
      %978 = vmatprep.subr.mxu0 0.0
      %979 = vmatpush1.msra.mxu0 %v940
      %980 = vmatprep.subr.mxu0 0.0
      %981 = vmatpush1.msra.mxu0 0.0
      %982 = vmatprep.subr.mxu0 0.0
      %983 = vmatpush1.msra.mxu0 0.0
      %984 = vmatprep.subr.mxu0 0.0
      %985 = vmatpush1.msra.mxu0 0.0
      %986 = vmatprep.subr.mxu0 0.0
      %987 = vmatpush1.msra.mxu0 0.0
      %988 = vmatprep.subr.mxu0 0.0
      %989 = vmatpush1.msra.mxu0 0.0
      %990 = vmatprep.subr.mxu0 0.0
      %991 = vmatpush1.msra.mxu0 0.0
      %992 = vmatprep.subr.mxu0 0.0
      %993 = vmatpush1.msra.mxu0 0.0
      %994 = vmatprep.subr.mxu0 0.0
      %995 = vmatpush1.msra.mxu0 0.0
      %996 = vmatprep.subr.mxu0 0.0
      %997 = vmatpush1.msra.mxu0 0.0
      %998 = vmatprep.subr.mxu0 0.0
      %999 = vmatpush1.msra.mxu0 0.0
      %1000 = vmatprep.subr.mxu0 0.0
      %1001 = vmatpush1.msra.mxu0 0.0
      %1002 = vmatprep.subr.mxu0 0.0
      %1003 = vmatpush1.msra.mxu0 0.0
      %1004 = vmatprep.subr.mxu0 0.0
      %1005 = vmatpush1.msra.mxu0 0.0
      %1006 = vmatprep.subr.mxu0 0.0
      %1007 = vmatpush1.msra.mxu0 0.0
      %1008 = vmatprep.subr.mxu0 0.0
      %1009 = vmatpush1.msra.mxu0 0.0
      %1010 = vmatprep.subr.mxu0 0.0
      %1011 = vmatpush1.msra.mxu0 0.0
      %1012 = vmatprep.mubr.f32.mxu0 0.0
      %1013 = vmatmul.mubr.f32.gmra.mrb[0].mxu0 %v893
      %v1014 = vpop.f32.mrb[0].mxu0
      %v1015 = vadd.f32 %v946, %v1014
      %v1016 = vpop.f32.mrb[0].mxu0
      %1017 = vmatprep.mubr.f32.mxu0 0.0
      %1018 = vmatmul.mubr.f32.gmra.mrb[0].mxu0 %v894
      %v1019 = vpop.f32.mrb[0].mxu0
      %v1020 = vadd.f32 %v946, %v1019
      %v1021 = vpop.f32.mrb[0].mxu0
      %1022 = vmatprep.mubr.f32.mxu0 0.0
      %1023 = vmatmul.mubr.f32.gmra.mrb[0].mxu0 %v895
      %v1024 = vpop.f32.mrb[0].mxu0
      %v1025 = vadd.f32 %v946, %v1024
      %v1026 = vpop.f32.mrb[0].mxu0
      %1027 = vmatprep.mubr.f32.mxu0 0.0
      %1028 = vmatmul.mubr.f32.gmra.mrb[0].mxu0 %v896
      %v1029 = vpop.f32.mrb[0].mxu0
      %v1030 = vadd.f32 %v946, %v1029
      %v1031 = vpop.f32.mrb[0].mxu0
      %1032 = vmatprep.mubr.f32.mxu0 0.0
      %1033 = vmatmul.mubr.f32.gmra.mrb[0].mxu0 %v897
      %v1034 = vpop.f32.mrb[0].mxu0
      %v1035 = vadd.f32 %v946, %v1034
      %v1036 = vpop.f32.mrb[0].mxu0
      %1037 = vmatprep.mubr.f32.mxu0 0.0
      %1038 = vmatmul.mubr.f32.gmra.mrb[0].mxu0 %v898
      %v1039 = vpop.f32.mrb[0].mxu0
      %v1040 = vadd.f32 %v946, %v1039
      %v1041 = vpop.f32.mrb[0].mxu0
      %1042 = vmatprep.mubr.f32.mxu0 0.0
      %1043 = vmatmul.mubr.f32.gmra.mrb[0].mxu0 %v899
      %v1044 = vpop.f32.mrb[0].mxu0
      %v1045 = vadd.f32 %v946, %v1044
      %v1046 = vpop.f32.mrb[0].mxu0
      %1047 = vmatprep.mubr.f32.mxu0 0.0
      %1048 = vmatmul.mubr.f32.gmra.mrb[0].mxu0 %v900
      %v1049 = vpop.f32.mrb[0].mxu0
      %v1050 = vadd.f32 %v946, %v1049
      %v1051 = vpop.f32.mrb[0].mxu0
      %1052 = vmatprep.mubr.f32.mxu0 0.0
      %1053 = vmatmul.mubr.f32.gmra.mrb[0].mxu0 %v901
      %v1054 = vpop.f32.mrb[0].mxu0
      %v1055 = vadd.f32 %v946, %v1054
      %v1056 = vpop.f32.mrb[0].mxu0
      %1057 = vmatprep.mubr.f32.mxu0 0.0
      %1058 = vmatmul.mubr.f32.gmra.mrb[0].mxu0 %v902
      %v1059 = vpop.f32.mrb[0].mxu0
      %v1060 = vadd.f32 %v946, %v1059
      %v1061 = vpop.f32.mrb[0].mxu0
      %1062 = vmatprep.mubr.f32.mxu0 0.0
      %1063 = vmatmul.mubr.f32.gmra.mrb[0].mxu0 %v903
      %v1064 = vpop.f32.mrb[0].mxu0
      %v1065 = vadd.f32 %v946, %v1064
      %v1066 = vpop.f32.mrb[0].mxu0
      %1067 = vmatprep.mubr.f32.mxu0 0.0
      %1068 = vmatmul.mubr.f32.gmra.mrb[0].mxu0 %v904
      %v1069 = vpop.f32.mrb[0].mxu0
      %v1070 = vadd.f32 %v946, %v1069
      %v1071 = vpop.f32.mrb[0].mxu0
      %1072 = vmatprep.mubr.f32.mxu0 0.0
      %1073 = vmatmul.mubr.f32.gmra.mrb[0].mxu0 %v905
      %v1074 = vpop.f32.mrb[0].mxu0
      %v1075 = vadd.f32 %v946, %v1074
      %v1076 = vpop.f32.mrb[0].mxu0
      %1077 = vmatprep.mubr.f32.mxu0 0.0
      %1078 = vmatmul.mubr.f32.gmra.mrb[0].mxu0 %v906
      %v1079 = vpop.f32.mrb[0].mxu0
      %v1080 = vadd.f32 %v946, %v1079
      %v1081 = vpop.f32.mrb[0].mxu0
      %1082 = vmatprep.mubr.f32.mxu0 0.0
      %1083 = vmatmul.mubr.f32.gmra.mrb[0].mxu0 %v907
      %v1084 = vpop.f32.mrb[0].mxu0
      %v1085 = vadd.f32 %v946, %v1084
      %v1086 = vpop.f32.mrb[0].mxu0
      %1087 = vmatprep.mubr.f32.mxu0 0.0
      %1088 = vmatmul.mubr.f32.gmra.mrb[0].mxu0 %v908
      %v1089 = vpop.f32.mrb[0].mxu0
      %v1090 = vadd.f32 %v946, %v1089
      %v1091 = vpop.f32.mrb[0].mxu0
      %1092 = vmatprep.mubr.f32.mxu0 0.0
      %1093 = vmatmul.mubr.f32.gmra.mrb[0].mxu0 %v909
      %v1094 = vpop.f32.mrb[0].mxu0
      %v1095 = vadd.f32 %v946, %v1094
      %v1096 = vpop.f32.mrb[0].mxu0
      %1097 = vmatprep.mubr.f32.mxu0 0.0
      %1098 = vmatmul.mubr.f32.gmra.mrb[0].mxu0 %v910
      %v1099 = vpop.f32.mrb[0].mxu0
      %v1100 = vadd.f32 %v946, %v1099
      %v1101 = vpop.f32.mrb[0].mxu0
      %1102 = vmatprep.mubr.f32.mxu0 0.0
      %1103 = vmatmul.mubr.f32.gmra.mrb[0].mxu0 %v911
      %v1104 = vpop.f32.mrb[0].mxu0
      %v1105 = vadd.f32 %v946, %v1104
      %v1106 = vpop.f32.mrb[0].mxu0
      %1107 = vmatprep.mubr.f32.mxu0 0.0
      %1108 = vmatmul.mubr.f32.gmra.mrb[0].mxu0 %v912
      %v1109 = vpop.f32.mrb[0].mxu0
      %v1110 = vadd.f32 %v946, %v1109
      %v1111 = vpop.f32.mrb[0].mxu0
      %1112 = vmatprep.mubr.f32.mxu0 0.0
      %1113 = vmatmul.mubr.f32.gmra.mrb[0].mxu0 %v913
      %v1114 = vpop.f32.mrb[0].mxu0
      %v1115 = vadd.f32 %v946, %v1114
      %v1116 = vpop.f32.mrb[0].mxu0
      %1117 = vmatprep.mubr.f32.mxu0 0.0
      %1118 = vmatmul.mubr.f32.gmra.mrb[0].mxu0 %v914
      %v1119 = vpop.f32.mrb[0].mxu0
      %v1120 = vadd.f32 %v946, %v1119
      %v1121 = vpop.f32.mrb[0].mxu0
      %1122 = vmatprep.mubr.f32.mxu0 0.0
      %1123 = vmatmul.mubr.f32.gmra.mrb[0].mxu0 %v915
      %v1124 = vpop.f32.mrb[0].mxu0
      %v1125 = vadd.f32 %v946, %v1124
      %v1126 = vpop.f32.mrb[0].mxu0
      %1127 = vmatprep.mubr.f32.mxu0 0.0
      %1128 = vmatmul.mubr.f32.gmra.mrb[0].mxu0 %v916
      %v1129 = vpop.f32.mrb[0].mxu0
      %v1130 = vadd.f32 %v946, %v1129
      %v1131 = vpop.f32.mrb[0].mxu0
      %1132 = vmatprep.mubr.f32.mxu0 0.0
      %1133 = vmatmul.mubr.f32.gmra.mrb[0].mxu0 %v917
      %v1134 = vpop.f32.mrb[0].mxu0
      %v1135 = vadd.f32 %v946, %v1134
      %v1136 = vpop.f32.mrb[0].mxu0
      %1137 = vmatprep.mubr.f32.mxu0 0.0
      %1138 = vmatmul.mubr.f32.gmra.mrb[0].mxu0 %v918
      %v1139 = vpop.f32.mrb[0].mxu0
      %v1140 = vadd.f32 %v946, %v1139
      %v1141 = vpop.f32.mrb[0].mxu0
      %1142 = vmatprep.mubr.f32.mxu0 0.0
      %1143 = vmatmul.mubr.f32.gmra.mrb[0].mxu0 %v919
      %v1144 = vpop.f32.mrb[0].mxu0
      %v1145 = vadd.f32 %v946, %v1144
      %v1146 = vpop.f32.mrb[0].mxu0
      %1147 = vmatprep.mubr.f32.mxu0 0.0
      %1148 = vmatmul.mubr.f32.gmra.mrb[0].mxu0 %v920
      %v1149 = vpop.f32.mrb[0].mxu0
      %v1150 = vadd.f32 %v946, %v1149
      %v1151 = vpop.f32.mrb[0].mxu0
      %1152 = vmatprep.mubr.f32.mxu0 0.0
      %1153 = vmatmul.mubr.f32.gmra.mrb[0].mxu0 %v921
      %v1154 = vpop.f32.mrb[0].mxu0
      %v1155 = vadd.f32 %v946, %v1154
      %v1156 = vpop.f32.mrb[0].mxu0
      %1157 = vmatprep.mubr.f32.mxu0 0.0
      %1158 = vmatmul.mubr.f32.gmra.mrb[0].mxu0 %v922
      %v1159 = vpop.f32.mrb[0].mxu0
      %v1160 = vadd.f32 %v946, %v1159
      %v1161 = vpop.f32.mrb[0].mxu0
      %1162 = vmatprep.mubr.f32.mxu0 0.0
      %1163 = vmatmul.mubr.f32.gmra.mrb[0].mxu0 %v923
      %v1164 = vpop.f32.mrb[0].mxu0
      %v1165 = vadd.f32 %v946, %v1164
      %v1166 = vpop.f32.mrb[0].mxu0
      %1167 = vmatprep.mubr.f32.mxu0 0.0
      %1168 = vmatmul.mubr.f32.gmra.mrb[0].mxu0 %v924
      %v1169 = vpop.f32.mrb[0].mxu0
      %v1170 = vadd.f32 %v946, %v1169
      %v1171 = vpop.f32.mrb[0].mxu0
      %1172 = vdwg.mxu0
      %vm1173 = vcmask 15360
      %1174 = vst.msk [vmem:[%s283] sm:$0xff] %vm1173, %v1015
      %1175 = vst.msk [vmem:[%s283 + $0x8] sm:$0xff] %vm1173, %v1020
      %1176 = vst.msk [vmem:[%s283 + $0x10] sm:$0xff] %vm1173, %v1025
      %1177 = vst.msk [vmem:[%s283 + $0x18] sm:$0xff] %vm1173, %v1030
      %1178 = vst.msk [vmem:[%s283 + $0x20] sm:$0xff] %vm1173, %v1035
      %1179 = vst.msk [vmem:[%s283 + $0x28] sm:$0xff] %vm1173, %v1040
      %1180 = vst.msk [vmem:[%s283 + $0x30] sm:$0xff] %vm1173, %v1045
      %1181 = vst.msk [vmem:[%s283 + $0x38] sm:$0xff] %vm1173, %v1050
      %1182 = vst.msk [vmem:[%s283 + $0x40] sm:$0xff] %vm1173, %v1055
      %1183 = vst.msk [vmem:[%s283 + $0x48] sm:$0xff] %vm1173, %v1060
      %1184 = vst.msk [vmem:[%s283 + $0x50] sm:$0xff] %vm1173, %v1065
      %1185 = vst.msk [vmem:[%s283 + $0x58] sm:$0xff] %vm1173, %v1070
      %1186 = vst.msk [vmem:[%s283 + $0x60] sm:$0xff] %vm1173, %v1075
      %1187 = vst.msk [vmem:[%s283 + $0x68] sm:$0xff] %vm1173, %v1080
      %1188 = vst.msk [vmem:[%s283 + $0x70] sm:$0xff] %vm1173, %v1085
      %1189 = vst.msk [vmem:[%s283 + $0x78] sm:$0xff] %vm1173, %v1090
      %1190 = vst.msk [vmem:[%s283 + $0x80] sm:$0xff] %vm1173, %v1095
      %1191 = vst.msk [vmem:[%s283 + $0x88] sm:$0xff] %vm1173, %v1100
      %1192 = vst.msk [vmem:[%s283 + $0x90] sm:$0xff] %vm1173, %v1105
      %1193 = vst.msk [vmem:[%s283 + $0x98] sm:$0xff] %vm1173, %v1110
      %1194 = vst.msk [vmem:[%s283 + $0xa0] sm:$0xff] %vm1173, %v1115
      %1195 = vst.msk [vmem:[%s283 + $0xa8] sm:$0xff] %vm1173, %v1120
      %1196 = vst.msk [vmem:[%s283 + $0xb0] sm:$0xff] %vm1173, %v1125
      %1197 = vst.msk [vmem:[%s283 + $0xb8] sm:$0xff] %vm1173, %v1130
      %1198 = vst.msk [vmem:[%s283 + $0xc0] sm:$0xff] %vm1173, %v1135
      %1199 = vst.msk [vmem:[%s283 + $0xc8] sm:$0xff] %vm1173, %v1140
      %1200 = vst.msk [vmem:[%s283 + $0xd0] sm:$0xff] %vm1173, %v1145
      %1201 = vst.msk [vmem:[%s283 + $0xd8] sm:$0xff] %vm1173, %v1150
      %1202 = vst.msk [vmem:[%s283 + $0xe0] sm:$0xff] %vm1173, %v1155
      %1203 = vst.msk [vmem:[%s283 + $0xe8] sm:$0xff] %vm1173, %v1160
      %1204 = vst.msk [vmem:[%s283 + $0xf0] sm:$0xff] %vm1173, %v1165
      %1205 = vst.msk [vmem:[%s283 + $0xf8] sm:$0xff] %vm1173, %v1170
      %s1206 = smul.u32 32, %s18
      %p1207 = scmp.lt.s32.totalorder %s1206, 63
      %s1208 = scalar_select %p1207, %s1206, 63
      %s1209 = smul.addr %s1208, 8
      %s1210 = scalar_lea.vmem %s7, %s1209
      // Predicated region
      $region49: #{neural_network_mod_forward.1} parent=47 // pred_check
        %p1211 = pneg %p188
      $region50: #{neural_network_mod_forward.1} parent=47 // pred_check_branch
        %1213 = sbr.rel (%p1211) target = $region52
      $region51: #{neural_network_mod_forward.1} parent=47 // pred_region
        %s1214 = smul.u32 32, %s18
      $region52: #{neural_network_mod_forward.1} parent=47 // pred_fallthru
        _
    $region48: #{neural_network_mod_forward.1} parent=5 // pred_fallthru
      _
    %p1215 = scmp.le.s32.totalorder 2, %s13
    // Predicated region
    $region53: #{neural_network_mod_forward.1} parent=5 // pred_check
      %p1216 = pneg %p1215
    $region54: #{neural_network_mod_forward.1} parent=5 // pred_check_branch
      %1218 = sbr.rel (%p1216) target = $region56
    $region55: #{neural_network_mod_forward.1} parent=5 // pred_region
      %s1219 = ssub.s32 %s13, 2
      // Predicated region
      $region57: #{neural_network_mod_forward.1} parent=55 // pred_check
        %p1220 = pneg %p194
      $region58: #{neural_network_mod_forward.1} parent=55 // pred_check_branch
        %1222 = sbr.rel (%p1220) target = $region60
      $region59: #{neural_network_mod_forward.1} parent=55 // pred_region
        %s1223 = smul.u32 32, %s19
        %p1224 = scmp.lt.s32.totalorder %s1223, 63
        %s1225 = scalar_select %p1224, %s1223, 63
        %s1226 = smul.addr %s1225, 8
        %s1227 = scalar_lea.vmem %s7, %s1226
      $region60: #{neural_network_mod_forward.1} parent=55 // pred_fallthru
        _
    $region56: #{neural_network_mod_forward.1} parent=5 // pred_fallthru
      _
  $region6: #{neural_network_mod_forward.1} parent=0 // loop_footer
    %s17 = sadd.s32 1, %s13
  $region7: #{neural_network_mod_forward.1} parent=0 // loop_footer_branch
    %12 = sbr.rel target = $region3
  $region8: #{neural_network_mod_forward.1} parent=0 // loop_exit
    _

</llo_original>
